<compile_context>
chip_gen: v7x
topology: tpu7x:2x2x1
jax: 0.10.0
libtpu: 0.0.40
codegen_flags: <defaults>
</compile_context>

<pallas_src>
import jax
import jax.numpy as jnp
from jax.experimental import pallas as pl
from jax.experimental.pallas import tpu as pltpu


def mlp_kernel(x_ref, w1_ref, b1_ref, w2_ref, b2_ref, o_ref):
    # One batch tile per grid step; the whole (tiny) weight set stays resident
    # in VMEM via constant index maps.
    x = x_ref[...]                                                   # (tb, in)
    h = jnp.dot(x, w1_ref[...], preferred_element_type=jnp.float32) + b1_ref[...]
    h = jnp.maximum(h, 0.0)                                          # ReLU, (tb, hidden)
    y = jnp.dot(h, w2_ref[...], preferred_element_type=jnp.float32) + b2_ref[...]
    o_ref[...] = y.astype(o_ref.dtype)                               # (tb, out) narrow store


def _round_up(n, m):
    return ((n + m - 1) // m) * m


def _pick_tile(batch, tile_b):
    """Batch tile: as large as possible (fewer grid steps), 8-row aligned,
    but split into >= 2 tiles for big batches so megacore (v7x) can shard."""
    tb = min(tile_b, _round_up(batch, 8))
    tb = max(8, _round_up(tb, 8))
    if batch > 2048 and pl.cdiv(batch, tb) < 2:
        tb = _round_up(pl.cdiv(batch, 2), 8)
    return tb


def mlp_forward(x, w1, b1, w2, b2, *, tile_b=4096):
    """x: (B, in_dim); w1: (in_dim, hidden); b1: (1, hidden);
    w2: (hidden, out_dim); b2: (1, out_dim). Returns (B, out_dim) f32."""
    x = x.astype(jnp.float32)
    w1 = w1.astype(jnp.float32)
    b1 = b1.astype(jnp.float32)
    w2 = w2.astype(jnp.float32)
    b2 = b2.astype(jnp.float32)

    batch, in_dim = x.shape
    hidden = w1.shape[1]
    out_dim = w2.shape[1]

    tb = _pick_tile(batch, tile_b)
    grid = (pl.cdiv(batch, tb),)

    # Real traffic: x in, y out, plus one pass over the (tiny) weights.
    cost = pl.CostEstimate(
        flops=2 * batch * (in_dim * hidden + hidden * out_dim),
        transcendentals=0,
        bytes_accessed=4 * (batch * (in_dim + out_dim)
                            + in_dim * hidden + hidden
                            + hidden * out_dim + out_dim),
    )

    return pl.pallas_call(
        mlp_kernel,
        out_shape=jax.ShapeDtypeStruct((batch, out_dim), jnp.float32),
        grid=grid,
        in_specs=[
            pl.BlockSpec((tb, in_dim), lambda i: (i, 0)),        # x: streamed per tile
            pl.BlockSpec((in_dim, hidden), lambda i: (0, 0)),    # w1: resident
            pl.BlockSpec((1, hidden), lambda i: (0, 0)),         # b1: resident
            pl.BlockSpec((hidden, out_dim), lambda i: (0, 0)),   # w2: resident
            pl.BlockSpec((1, out_dim), lambda i: (0, 0)),        # b2: resident
        ],
        out_specs=pl.BlockSpec((tb, out_dim), lambda i: (i, 0)),
        compiler_params=pltpu.CompilerParams(
            # Batch tiles are independent -> megacore sharding on v7x's 2 TCs.
            dimension_semantics=("parallel",),
        ),
        cost_estimate=cost,
    )(x, w1, b1, w2, b2)


def init_params(key, input_dim=8, hidden_dim=64, output_dim=4):
    k1, k2, k3, k4 = jax.random.split(key, 4)
    # nn.Linear weights re-initialized with normal(0, 0.1) in the module.
    # Stored as (in, out) = transpose of PyTorch's (out, in).
    w1 = jax.random.normal(k1, (input_dim, hidden_dim), jnp.float32) * 0.1
    w2 = jax.random.normal(k2, (hidden_dim, output_dim), jnp.float32) * 0.1
    # Biases keep PyTorch's default U(-1/sqrt(fan_in), 1/sqrt(fan_in)).
    bound1 = 1.0 / jnp.sqrt(float(input_dim))
    bound2 = 1.0 / jnp.sqrt(float(hidden_dim))
    b1 = jax.random.uniform(k3, (1, hidden_dim), jnp.float32, -bound1, bound1)
    b2 = jax.random.uniform(k4, (1, output_dim), jnp.float32, -bound2, bound2)
    return w1, b1, w2, b2


def _reference(x, w1, b1, w2, b2):
    return jnp.maximum(x @ w1 + b1, 0.0) @ w2 + b2


if __name__ == "__main__":
    key = jax.random.PRNGKey(0)
    k_x1, k_x2, k_p = jax.random.split(key, 3)

    input_dim, hidden_dim, output_dim = 8, 64, 4
    w1, b1, w2, b2 = init_params(k_p, input_dim, hidden_dim, output_dim)

    # Case 1: small batch (not a multiple of 8) — exercises the partial-block path.
    x_small = jax.random.normal(k_x1, (10, input_dim), jnp.float32)
    out_small = jax.block_until_ready(mlp_forward(x_small, w1, b1, w2, b2))
    ref_small = _reference(x_small, w1, b1, w2, b2)
    assert out_small.shape == (10, output_dim)
    assert jnp.allclose(out_small, ref_small, atol=1e-5, rtol=1e-5)

    # Case 2: larger batch with a smaller tile — exercises the multi-tile grid
    # (including a partial last tile: 1000 = 3*256 + 232).
    x_big = jax.random.normal(k_x2, (1000, input_dim), jnp.float32)
    out_big = jax.block_until_ready(mlp_forward(x_big, w1, b1, w2, b2, tile_b=256))
    ref_big = _reference(x_big, w1, b1, w2, b2)
    assert out_big.shape == (1000, output_dim)
    assert jnp.allclose(out_big, ref_big, atol=1e-5, rtol=1e-5)

    print("KERNEL_OK")
</pallas_src>

<mosaic_0001>
module attributes {stable_mosaic.version = 11 : i64} {
  func.func @mlp_kernel(%arg0: i32, %arg1: memref<16x8xf32, #tpu.memory_space<vmem>>, %arg2: memref<8x64xf32, #tpu.memory_space<vmem>>, %arg3: memref<1x64xf32, #tpu.memory_space<vmem>>, %arg4: memref<64x4xf32, #tpu.memory_space<vmem>>, %arg5: memref<1x4xf32, #tpu.memory_space<vmem>>, %arg6: memref<16x4xf32, #tpu.memory_space<vmem>>) attributes {dimension_semantics = [#tpu.dimension_semantics<parallel>], iteration_bounds = array<i64: 1>, scalar_prefetch = 0 : i64, scratch_operands = 0 : i64, tpu.core_type = #tpu.core_type<tc>, window_params = [{transform_indices = @transform_0, window_bounds = array<i64: 16, 8>}, {pipeline_mode = #tpu.pipeline_mode<synchronous>, transform_indices = @transform_1, window_bounds = array<i64: 8, 64>}, {pipeline_mode = #tpu.pipeline_mode<synchronous>, transform_indices = @transform_2, window_bounds = array<i64: 1, 64>}, {pipeline_mode = #tpu.pipeline_mode<synchronous>, transform_indices = @transform_3, window_bounds = array<i64: 64, 4>}, {pipeline_mode = #tpu.pipeline_mode<synchronous>, transform_indices = @transform_4, window_bounds = array<i64: 1, 4>}, {transform_indices = @transform_5, window_bounds = array<i64: 16, 4>}]} {
    %c0 = arith.constant 0 : index
    %c0_0 = arith.constant 0 : index
    %0 = vector.load %arg1[%c0, %c0_0] : memref<16x8xf32, #tpu.memory_space<vmem>>, vector<16x8xf32>
    %c0_1 = arith.constant 0 : index
    %c0_2 = arith.constant 0 : index
    %1 = vector.load %arg2[%c0_1, %c0_2] : memref<8x64xf32, #tpu.memory_space<vmem>>, vector<8x64xf32>
    %cst = arith.constant dense<0.000000e+00> : vector<16x64xf32>
    %2 = tpu.matmul %0, %1, %cst {dimension_numbers = #tpu.dot_dimension_numbers<[1], [0], [0], [1], [0, 0, 1, 1], [], []>} : vector<16x8xf32>, vector<8x64xf32>, vector<16x64xf32> -> vector<16x64xf32>
    %c0_3 = arith.constant 0 : index
    %c0_4 = arith.constant 0 : index
    %3 = vector.load %arg3[%c0_3, %c0_4] : memref<1x64xf32, #tpu.memory_space<vmem>>, vector<1x64xf32>
    %4 = vector.broadcast %3 : vector<1x64xf32> to vector<16x64xf32>
    %5 = arith.addf %2, %4 : vector<16x64xf32>
    %cst_5 = arith.constant 0.000000e+00 : f32
    %6 = vector.broadcast %cst_5 : f32 to vector<16x64xf32>
    %7 = arith.maximumf %5, %6 : vector<16x64xf32>
    %c0_6 = arith.constant 0 : index
    %c0_7 = arith.constant 0 : index
    %8 = vector.load %arg4[%c0_6, %c0_7] : memref<64x4xf32, #tpu.memory_space<vmem>>, vector<64x4xf32>
    %cst_8 = arith.constant dense<0.000000e+00> : vector<16x4xf32>
    %9 = tpu.matmul %7, %8, %cst_8 {dimension_numbers = #tpu.dot_dimension_numbers<[1], [0], [0], [1], [0, 0, 1, 1], [], []>} : vector<16x64xf32>, vector<64x4xf32>, vector<16x4xf32> -> vector<16x4xf32>
    %c0_9 = arith.constant 0 : index
    %c0_10 = arith.constant 0 : index
    %10 = vector.load %arg5[%c0_9, %c0_10] : memref<1x4xf32, #tpu.memory_space<vmem>>, vector<1x4xf32>
    %11 = vector.broadcast %10 : vector<1x4xf32> to vector<16x4xf32>
    %12 = arith.addf %9, %11 : vector<16x4xf32>
    %c0_11 = arith.constant 0 : index
    %c0_12 = arith.constant 0 : index
    %13 = vector.load %arg6[%c0_11, %c0_12] : memref<16x4xf32, #tpu.memory_space<vmem>>, vector<16x4xf32>
    tpu.vector_store %arg6[%c0_11, %c0_12], %12 {strides = array<i32>} : memref<16x4xf32, #tpu.memory_space<vmem>>, vector<16x4xf32>,
    return
  }
  func.func @transform_0(%arg0: i32) -> (i32, i32) {
    %c0_i32 = arith.constant 0 : i32
    %c0_i32_0 = arith.constant 0 : i32
    return %arg0, %c0_i32 : i32, i32
  }
  func.func @transform_1(%arg0: i32) -> (i32, i32) {
    %c0_i32 = arith.constant 0 : i32
    %c0_i32_0 = arith.constant 0 : i32
    %c0_i32_1 = arith.constant 0 : i32
    return %c0_i32, %c0_i32_0 : i32, i32
  }
  func.func @transform_2(%arg0: i32) -> (i32, i32) {
    %c0_i32 = arith.constant 0 : i32
    %c0_i32_0 = arith.constant 0 : i32
    %c0_i32_1 = arith.constant 0 : i32
    return %c0_i32, %c0_i32_0 : i32, i32
  }
  func.func @transform_3(%arg0: i32) -> (i32, i32) {
    %c0_i32 = arith.constant 0 : i32
    %c0_i32_0 = arith.constant 0 : i32
    %c0_i32_1 = arith.constant 0 : i32
    return %c0_i32, %c0_i32_0 : i32, i32
  }
  func.func @transform_4(%arg0: i32) -> (i32, i32) {
    %c0_i32 = arith.constant 0 : i32
    %c0_i32_0 = arith.constant 0 : i32
    %c0_i32_1 = arith.constant 0 : i32
    return %c0_i32, %c0_i32_0 : i32, i32
  }
  func.func @transform_5(%arg0: i32) -> (i32, i32) {
    %c0_i32 = arith.constant 0 : i32
    %c0_i32_0 = arith.constant 0 : i32
    return %arg0, %c0_i32 : i32, i32
  }
}

</mosaic_0001>

<llo_original>
// kernel: tpu_custom_call.1
$region0: #{tpu_custom_call.1}
  #allocation0 [shape = 'u32[]', space=smem, size = 0x4, offset = 0x4, fixed_abs, tag = 'smem constant byte address 0x4 - core index']
  #allocation1 [shape = 'u32[144,128]{1,0:T(1,128)}', space=vmem, size = 0x12000, scoped, tag = 'internal scratch']
  %s0 = inlined_call_operand.vmem [shape: f32[10,8], index: 0, kind: input, shape index: {}]
  %s1 = inlined_call_operand.vmem [shape: f32[8,64], index: 1, kind: input, shape index: {}]
  %s2 = inlined_call_operand.vmem [shape: f32[1,64], index: 2, kind: input, shape index: {}]
  %s3 = inlined_call_operand.vmem [shape: f32[64,4], index: 3, kind: input, shape index: {}]
  %s4 = inlined_call_operand.vmem [shape: f32[1,4], index: 4, kind: input, shape index: {}]
  %s5 = inlined_call_operand.vmem [shape: f32[10,4], index: 5, kind: output, shape index: {}]
  %s6 = sld [smem:[#allocation0]]
  $region30: #{tpu_custom_call.1} parent=0
    _
  %s8 = ssub.s32 1, %s6
  %s9 = scalar_select 0, %s8, %s6
  // Predicated region
  $region2: #{tpu_custom_call.1} parent=0 // pred_check
    _
  $region3: #{tpu_custom_call.1} parent=0 // pred_check_branch
    %11 = sbr.rel (0) target = $region5
  $region4: #{tpu_custom_call.1} parent=0 // pred_region
    _
  $region5: #{tpu_custom_call.1} parent=0 // pred_fallthru
    _
  // Predicated region
  $region6: #{tpu_custom_call.1} parent=0 // pred_check
    _
  $region7: #{tpu_custom_call.1} parent=0 // pred_check_branch
    %13 = sbr.rel (0) target = $region9
  $region8: #{tpu_custom_call.1} parent=0 // pred_region
    _
  $region9: #{tpu_custom_call.1} parent=0 // pred_fallthru
    _
  // Predicated region
  $region10: #{tpu_custom_call.1} parent=0 // pred_check
    _
  $region11: #{tpu_custom_call.1} parent=0 // pred_check_branch
    %15 = sbr.rel (0) target = $region13
  $region12: #{tpu_custom_call.1} parent=0 // pred_region
    _
  $region13: #{tpu_custom_call.1} parent=0 // pred_fallthru
    _
  // Predicated region
  $region14: #{tpu_custom_call.1} parent=0 // pred_check
    _
  $region15: #{tpu_custom_call.1} parent=0 // pred_check_branch
    %17 = sbr.rel (0) target = $region17
  $region16: #{tpu_custom_call.1} parent=0 // pred_region
    _
  $region17: #{tpu_custom_call.1} parent=0 // pred_fallthru
    _
  // Predicated region
  $region18: #{tpu_custom_call.1} parent=0 // pred_check
    _
  $region19: #{tpu_custom_call.1} parent=0 // pred_check_branch
    %19 = sbr.rel (0) target = $region21
  $region20: #{tpu_custom_call.1} parent=0 // pred_region
    _
  $region21: #{tpu_custom_call.1} parent=0 // pred_fallthru
    _
  %v20 = vld [vmem:[%s0] sm:$0xff]
  %v21 = vld [vmem:[%s0 + $0x8] sm:$0xff]
  %v22 = vld [vmem:[%s1] sm:$0xff]
  %v23 = vld [vmem:[%s2] sm:$0x1]
  %v25 = vlaneseq
  %v26 = vshrl.u32 %v25, 7
  %v27 = vsub.s32 0, %v26
  %v28 = vrot.slane %v23, %v27
  %vm30 = vcmask 64512
  %v32 = vsel %vm30, %v20, 0
  %v35 = vsel %vm30, %v21, 0
  %37 = vmatprep.subr.mxu0 0.0
  %38 = vmatpush1.msra.mxu0 %v22
  %39 = vmatprep.subr.mxu0 0.0
  %40 = vmatpush1.msra.mxu0 0.0
  %41 = vmatprep.subr.mxu0 0.0
  %42 = vmatpush1.msra.mxu0 0.0
  %43 = vmatprep.subr.mxu0 0.0
  %44 = vmatpush1.msra.mxu0 0.0
  %45 = vmatprep.subr.mxu0 0.0
  %46 = vmatpush1.msra.mxu0 0.0
  %47 = vmatprep.subr.mxu0 0.0
  %48 = vmatpush1.msra.mxu0 0.0
  %49 = vmatprep.subr.mxu0 0.0
  %50 = vmatpush1.msra.mxu0 0.0
  %51 = vmatprep.subr.mxu0 0.0
  %52 = vmatpush1.msra.mxu0 0.0
  %53 = vmatprep.subr.mxu0 0.0
  %54 = vmatpush1.msra.mxu0 0.0
  %55 = vmatprep.subr.mxu0 0.0
  %56 = vmatpush1.msra.mxu0 0.0
  %57 = vmatprep.subr.mxu0 0.0
  %58 = vmatpush1.msra.mxu0 0.0
  %59 = vmatprep.subr.mxu0 0.0
  %60 = vmatpush1.msra.mxu0 0.0
  %61 = vmatprep.subr.mxu0 0.0
  %62 = vmatpush1.msra.mxu0 0.0
  %63 = vmatprep.subr.mxu0 0.0
  %64 = vmatpush1.msra.mxu0 0.0
  %65 = vmatprep.subr.mxu0 0.0
  %66 = vmatpush1.msra.mxu0 0.0
  %67 = vmatprep.subr.mxu0 0.0
  %68 = vmatpush1.msra.mxu0 0.0
  %69 = vmatprep.subr.mxu0 0.0
  %70 = vmatpush1.msra.mxu0 0.0
  %71 = vmatprep.subr.mxu0 0.0
  %72 = vmatpush1.msra.mxu0 0.0
  %73 = vmatprep.subr.mxu0 0.0
  %74 = vmatpush1.msra.mxu0 0.0
  %75 = vmatprep.subr.mxu0 0.0
  %76 = vmatpush1.msra.mxu0 0.0
  %77 = vmatprep.subr.mxu0 0.0
  %78 = vmatpush1.msra.mxu0 0.0
  %79 = vmatprep.subr.mxu0 0.0
  %80 = vmatpush1.msra.mxu0 0.0
  %81 = vmatprep.subr.mxu0 0.0
  %82 = vmatpush1.msra.mxu0 0.0
  %83 = vmatprep.subr.mxu0 0.0
  %84 = vmatpush1.msra.mxu0 0.0
  %85 = vmatprep.subr.mxu0 0.0
  %86 = vmatpush1.msra.mxu0 0.0
  %87 = vmatprep.subr.mxu0 0.0
  %88 = vmatpush1.msra.mxu0 0.0
  %89 = vmatprep.subr.mxu0 0.0
  %90 = vmatpush1.msra.mxu0 0.0
  %91 = vmatprep.subr.mxu0 0.0
  %92 = vmatpush1.msra.mxu0 0.0
  %93 = vmatprep.subr.mxu0 0.0
  %94 = vmatpush1.msra.mxu0 0.0
  %95 = vmatprep.subr.mxu0 0.0
  %96 = vmatpush1.msra.mxu0 0.0
  %97 = vmatprep.subr.mxu0 0.0
  %98 = vmatpush1.msra.mxu0 0.0
  %99 = vmatprep.subr.mxu0 0.0
  %100 = vmatpush1.msra.mxu0 0.0
  %101 = vmatprep.mubr.f32.mxu0 0.0
  %102 = vmatmul.mubr.f32.gmra.mrb[0].mxu0 %v32
  %v103 = vpop.f32.mrb[0].mxu0
  %v104 = vadd.f32 %v28, %v103
  %v105 = vpop.f32.mrb[0].mxu0
  %106 = vmatprep.mubr.f32.mxu0 0.0
  %107 = vmatmul.mubr.f32.gmra.mrb[0].mxu0 %v35
  %v108 = vpop.f32.mrb[0].mxu0
  %v109 = vadd.f32 %v28, %v108
  %v110 = vpop.f32.mrb[0].mxu0
  %111 = vdwg.mxu0
  %v112 = vmax.f32 %v104, 0.0
  %v113 = vmax.f32 %v109, 0.0
  %v114 = vld [vmem:[%s3] sm:$0xff]
  %v115 = vld [vmem:[%s3 + $0x8] sm:$0xff]
  %v116 = vld [vmem:[%s3 + $0x10] sm:$0xff]
  %v117 = vld [vmem:[%s3 + $0x18] sm:$0xff]
  %v118 = vld [vmem:[%s3 + $0x20] sm:$0xff]
  %v119 = vld [vmem:[%s3 + $0x28] sm:$0xff]
  %v120 = vld [vmem:[%s3 + $0x30] sm:$0xff]
  %v121 = vld [vmem:[%s3 + $0x38] sm:$0xff]
  %v122 = vld [vmem:[%s4] sm:$0x1]
  %v124 = vlaneseq
  %v125 = vshrl.u32 %v124, 7
  %v126 = vsub.s32 0, %v125
  %v127 = vrot.slane %v122, %v126
  %vm129 = vcmask 523264
  %v131 = vsel %vm129, %v112, 0
  %v134 = vsel %vm129, %v113, 0
  %136 = vmatprep.subr.mxu0 0.0
  %137 = vmatpush1.msra.mxu0 %v114
  %138 = vmatprep.subr.mxu0 0.0
  %139 = vmatpush1.msra.mxu0 %v115
  %140 = vmatprep.subr.mxu0 0.0
  %141 = vmatpush1.msra.mxu0 %v116
  %142 = vmatprep.subr.mxu0 0.0
  %143 = vmatpush1.msra.mxu0 %v117
  %144 = vmatprep.subr.mxu0 0.0
  %145 = vmatpush1.msra.mxu0 %v118
  %146 = vmatprep.subr.mxu0 0.0
  %147 = vmatpush1.msra.mxu0 %v119
  %148 = vmatprep.subr.mxu0 0.0
  %149 = vmatpush1.msra.mxu0 %v120
  %150 = vmatprep.subr.mxu0 0.0
  %151 = vmatpush1.msra.mxu0 %v121
  %152 = vmatprep.subr.mxu0 0.0
  %153 = vmatpush1.msra.mxu0 0.0
  %154 = vmatprep.subr.mxu0 0.0
  %155 = vmatpush1.msra.mxu0 0.0
  %156 = vmatprep.subr.mxu0 0.0
  %157 = vmatpush1.msra.mxu0 0.0
  %158 = vmatprep.subr.mxu0 0.0
  %159 = vmatpush1.msra.mxu0 0.0
  %160 = vmatprep.subr.mxu0 0.0
  %161 = vmatpush1.msra.mxu0 0.0
  %162 = vmatprep.subr.mxu0 0.0
  %163 = vmatpush1.msra.mxu0 0.0
  %164 = vmatprep.subr.mxu0 0.0
  %165 = vmatpush1.msra.mxu0 0.0
  %166 = vmatprep.subr.mxu0 0.0
  %167 = vmatpush1.msra.mxu0 0.0
  %168 = vmatprep.subr.mxu0 0.0
  %169 = vmatpush1.msra.mxu0 0.0
  %170 = vmatprep.subr.mxu0 0.0
  %171 = vmatpush1.msra.mxu0 0.0
  %172 = vmatprep.subr.mxu0 0.0
  %173 = vmatpush1.msra.mxu0 0.0
  %174 = vmatprep.subr.mxu0 0.0
  %175 = vmatpush1.msra.mxu0 0.0
  %176 = vmatprep.subr.mxu0 0.0
  %177 = vmatpush1.msra.mxu0 0.0
  %178 = vmatprep.subr.mxu0 0.0
  %179 = vmatpush1.msra.mxu0 0.0
  %180 = vmatprep.subr.mxu0 0.0
  %181 = vmatpush1.msra.mxu0 0.0
  %182 = vmatprep.subr.mxu0 0.0
  %183 = vmatpush1.msra.mxu0 0.0
  %184 = vmatprep.subr.mxu0 0.0
  %185 = vmatpush1.msra.mxu0 0.0
  %186 = vmatprep.subr.mxu0 0.0
  %187 = vmatpush1.msra.mxu0 0.0
  %188 = vmatprep.subr.mxu0 0.0
  %189 = vmatpush1.msra.mxu0 0.0
  %190 = vmatprep.subr.mxu0 0.0
  %191 = vmatpush1.msra.mxu0 0.0
  %192 = vmatprep.subr.mxu0 0.0
  %193 = vmatpush1.msra.mxu0 0.0
  %194 = vmatprep.subr.mxu0 0.0
  %195 = vmatpush1.msra.mxu0 0.0
  %196 = vmatprep.subr.mxu0 0.0
  %197 = vmatpush1.msra.mxu0 0.0
  %198 = vmatprep.subr.mxu0 0.0
  %199 = vmatpush1.msra.mxu0 0.0
  %200 = vmatprep.mubr.f32.mxu0 0.0
  %201 = vmatmul.mubr.f32.gmra.mrb[0].mxu0 %v131
  %v202 = vpop.f32.mrb[0].mxu0
  %v203 = vadd.f32 %v127, %v202
  %v204 = vpop.f32.mrb[0].mxu0
  %205 = vmatprep.mubr.f32.mxu0 0.0
  %206 = vmatmul.mubr.f32.gmra.mrb[0].mxu0 %v134
  %v207 = vpop.f32.mrb[0].mxu0
  %v208 = vadd.f32 %v127, %v207
  %v209 = vpop.f32.mrb[0].mxu0
  %210 = vdwg.mxu0
  %vm211 = vcmask 31744
  %212 = vst.msk [vmem:[%s5] sm:$0xff] %vm211, %v203
  %213 = vst.msk [vmem:[%s5 + $0x8] sm:$0xff] %vm211, %v208
  // Predicated region
  $region22: #{tpu_custom_call.1} parent=0 // pred_check
    _
  $region23: #{tpu_custom_call.1} parent=0 // pred_check_branch
    %215 = sbr.rel (0) target = $region25
  $region24: #{tpu_custom_call.1} parent=0 // pred_region
    _
  $region25: #{tpu_custom_call.1} parent=0 // pred_fallthru
    _
  // Predicated region
  $region26: #{tpu_custom_call.1} parent=0 // pred_check
    _
  $region27: #{tpu_custom_call.1} parent=0 // pred_check_branch
    %217 = sbr.rel (0) target = $region29
  $region28: #{tpu_custom_call.1} parent=0 // pred_region
    _
  $region29: #{tpu_custom_call.1} parent=0 // pred_fallthru
    _

</llo_original>
